<compile_context>
chip_gen: v5e
topology: v5e:2x2
jax: 0.10.0
libtpu: 0.0.40
codegen_flags: <defaults>
</compile_context>

<pallas_src>
import functools
import math

import jax
import jax.numpy as jnp
from jax import lax
from jax.experimental import pallas as pl
from jax.experimental.pallas import tpu as pltpu


_MASK_VALUE = -1e30               # finite: avoids (-inf)-(-inf) NaNs in the stable softmax
_LOG2E = 1.4426950408889634       # scores kept in the log2 domain -> exp2 on the EUP


# ----------------------------------------------------------------------------
# shared kernel pieces
# ----------------------------------------------------------------------------

def _qk_log2(q_ref, k_ref, scale_log2e):
    """(tq, tk) scores in the log2 domain. bf16 MXU matmul, f32 acc, no K transpose."""
    q = (q_ref[0] * scale_log2e).astype(jnp.bfloat16)
    k = k_ref[0].astype(jnp.bfloat16)
    return lax.dot_general(q, k, dimension_numbers=(((1,), (1,)), ((), ())),
                           preferred_element_type=jnp.float32)


def _init_state(m_sc, l_sc, acc_sc):
    m_sc[...] = jnp.full_like(m_sc, -jnp.inf)
    l_sc[...] = jnp.zeros_like(l_sc)
    acc_sc[...] = jnp.zeros_like(acc_sc)


def _online_update(s, p_mask, v, m_sc, l_sc, acc_sc):
    """One flash / online-softmax step (s already in the log2 domain)."""
    m_prev = m_sc[...]
    m_new = jnp.maximum(m_prev, jnp.max(s, axis=-1, keepdims=True))
    alpha = jnp.exp2(m_prev - m_new)
    p = jnp.exp2(s - m_new)
    if p_mask is not None:
        p = jnp.where(p_mask, p, 0.0)
    l_sc[...] = alpha * l_sc[...] + jnp.sum(p, axis=-1, keepdims=True)
    acc_sc[...] = alpha * acc_sc[...] + jnp.dot(
        p.astype(jnp.bfloat16), v.astype(jnp.bfloat16),
        preferred_element_type=jnp.float32)
    m_sc[...] = m_new


def _finalize(o_ref, l_sc, acc_sc):
    l = l_sc[...]
    inv_l = pl.reciprocal(l, approx=True)       # EUP slot (idle otherwise after exp2)
    inv_l = inv_l * (2.0 - l * inv_l)           # one Newton step -> ~f32 accuracy
    o_ref[0] = (acc_sc[...] * inv_l).astype(o_ref.dtype)


# ----------------------------------------------------------------------------
# kernels
# ----------------------------------------------------------------------------

def _flash_kernel_nomask(q_ref, k_ref, v_ref, o_ref, m_sc, l_sc, acc_sc,
                         *, scale_log2e):
    """valid_lens is None: no mask chain at all."""
    ki = pl.program_id(2)

    @pl.when(ki == 0)
    def _():
        _init_state(m_sc, l_sc, acc_sc)

    s = _qk_log2(q_ref, k_ref, scale_log2e)
    _online_update(s, None, v_ref[0], m_sc, l_sc, acc_sc)

    @pl.when(ki == pl.num_programs(2) - 1)
    def _():
        _finalize(o_ref, l_sc, acc_sc)


def _flash_kernel_masked(vl_info_ref, q_ref, k_ref, v_ref, vl_ref, o_ref,
                         m_sc, l_sc, acc_sc, *, scale_log2e, k_tile, nq):
    """Masked variant, scalar-prefetch gated.

    vl_info_ref (SMEM, (3, B*nq) int32):
      row 0: per-(batch, q-tile) min valid length
      row 1: per-(batch, q-tile) max valid length
      row 2: last valid K-tile index (used by the K/V index_map clamp)
    """
    b, qi, ki = pl.program_id(0), pl.program_id(1), pl.program_id(2)

    @pl.when(ki == 0)
    def _():
        _init_state(m_sc, l_sc, acc_sc)

    idx = b * nq + qi
    vl_min = vl_info_ref[0, idx]
    vl_max = vl_info_ref[1, idx]
    tile_start = ki * k_tile

    @pl.when(tile_start < vl_max)                    # skip fully-masked K tiles entirely
    def _():
        s = _qk_log2(q_ref, k_ref, scale_log2e)
        v = v_ref[0]

        @pl.when(vl_min >= tile_start + k_tile)      # fully-valid tile: no mask chain
        def _():
            _online_update(s, None, v, m_sc, l_sc, acc_sc)

        @pl.when(vl_min < tile_start + k_tile)       # straddling tile: mask key columns
        def _():
            vl_rel = vl_ref[0] - tile_start          # (tq, 1); ki-independent iota below
            col = lax.broadcasted_iota(jnp.int32, s.shape, 1)
            valid = col < vl_rel
            _online_update(jnp.where(valid, s, _MASK_VALUE), valid, v,
                           m_sc, l_sc, acc_sc)

    @pl.when(ki == pl.num_programs(2) - 1)
    def _():
        _finalize(o_ref, l_sc, acc_sc)


def _attn_weights_kernel(q_ref, k_ref, vl_ref, w_ref, *, scale_log2e):
    """Compat path: full (tq, K) normalized attention weights per Q tile.

    Off by default (avoids the O(B*Q*K) HBM writeback).
    # TODO(synk): tile the K dim (two-pass reuse of flash m/l) for very long K (v7x VMEM).
    """
    s = _qk_log2(q_ref, k_ref, scale_log2e)
    vl = vl_ref[0]                                   # (tq, 1) int32
    col = lax.broadcasted_iota(jnp.int32, s.shape, 1)
    valid = col < vl
    s = jnp.where(valid, s, _MASK_VALUE)
    e = jnp.exp2(s - jnp.max(s, axis=-1, keepdims=True))
    e = jnp.where(valid, e, 0.0)
    denom = jnp.sum(e, axis=-1, keepdims=True)
    inv = pl.reciprocal(denom, approx=True)
    inv = inv * (2.0 - denom * inv)
    w_ref[0] = (e * inv).astype(w_ref.dtype)


# ----------------------------------------------------------------------------
# wrapper
# ----------------------------------------------------------------------------

def _round_up(x, m):
    return (x + m - 1) // m * m


def _choose_tile(dim, candidates):
    """Pick (tile, padded_dim). Never returns a block bigger than the largest candidate
    for dims >= 128, so non-divisible long sequences pad instead of blowing VMEM."""
    for c in candidates:
        if dim >= c and dim % c == 0:
            return c, dim
    for c in candidates:
        if dim >= c:
            return c, _round_up(dim, c)
    t = _round_up(dim, 8)            # small dim: single, sublane-aligned tile
    return t, t


def dot_product_attention(queries, keys, values, valid_lens=None, *,
                          return_weights=False, q_tile=None, k_tile=None):
    """Pallas implementation of DotProductAttention.forward (eval mode).

    Returns `out`, or `(out, attention_weights)` if return_weights=True.
    Note: rows with valid_len == 0 yield NaN, matching softmax over an all -inf row
    in the reference module.
    """
    B, Q, D = queries.shape
    Bk, K, Dk = keys.shape
    Bv, Kv, V = values.shape
    assert (B, D) == (Bk, Dk) and (B, K) == (Bv, Kv)

    scale_log2e = _LOG2E / math.sqrt(D)   # fold log2(e) into Q scaling -> exp2 softmax

    # ---- tile selection (large tiles amortize per-step overhead + K/V HBM re-reads) ----
    if q_tile is None:
        tq, Qp = _choose_tile(Q, (512, 256, 128))
        # v7x has 2 TensorCores: keep >= 2 programs on the parallel grid axes.
        while B * (Qp // tq) < 2 and tq % 16 == 0:
            tq //= 2
    else:
        tq, Qp = q_tile, _round_up(Q, q_tile)
    if k_tile is None:
        tk, Kp = _choose_tile(K, (512, 256, 128))
    else:
        tk, Kp = k_tile, _round_up(K, k_tile)
    nq, nk = Qp // tq, Kp // tk

    if Qp != Q:
        queries = jnp.pad(queries, ((0, 0), (0, Qp - Q), (0, 0)))
    if Kp != K:
        keys = jnp.pad(keys, ((0, 0), (0, Kp - K), (0, 0)))
        values = jnp.pad(values, ((0, 0), (0, Kp - K), (0, 0)))

    compiler_params = pltpu.CompilerParams(
        dimension_semantics=("parallel", "parallel", "arbitrary"),
        vmem_limit_bytes=32 * 1024 * 1024)
    scratch = [pltpu.VMEM((tq, 1), jnp.float32),   # running max (log2 domain)
               pltpu.VMEM((tq, 1), jnp.float32),   # running denom
               pltpu.VMEM((tq, V), jnp.float32)]   # running output accumulator

    need_mask = (valid_lens is not None) or (Kp != K)
    vl = None

    if not need_mask:
        out = pl.pallas_call(
            functools.partial(_flash_kernel_nomask, scale_log2e=scale_log2e),
            out_shape=jax.ShapeDtypeStruct((B, Qp, V), queries.dtype),
            grid_spec=pltpu.PrefetchScalarGridSpec(
                num_scalar_prefetch=0,
                grid=(B, nq, nk),
                in_specs=[
                    pl.BlockSpec((1, tq, D), lambda b, qi, ki: (b, qi, 0)),
                    pl.BlockSpec((1, tk, D), lambda b, qi, ki: (b, ki, 0)),
                    pl.BlockSpec((1, tk, V), lambda b, qi, ki: (b, ki, 0)),
                ],
                out_specs=pl.BlockSpec((1, tq, V), lambda b, qi, ki: (b, qi, 0)),
                scratch_shapes=scratch),
            compiler_params=compiler_params,
        )(queries, keys, values)
    else:
        # Normalize valid_lens to per-(batch, query) lengths (mirrors masked_softmax).
        if valid_lens is None:
            vl = jnp.full((B, Q), K, dtype=jnp.int32)
        else:
            vl = jnp.asarray(valid_lens).astype(jnp.int32)
            if vl.ndim == 1:
                vl = jnp.broadcast_to(vl[:, None], (B, Q))   # repeat_interleave over queries
            elif vl.ndim == 2:
                assert vl.shape == (B, Q)
            else:
                raise ValueError("valid_lens must be None, (B,), or (B, Q)")
        if Qp != Q:
            vl = jnp.pad(vl, ((0, 0), (0, Qp - Q)), mode="edge")  # padded rows stay benign

        # Scalar-prefetch table: per-(batch, q-tile) min/max valid len + last valid K tile.
        vl_t = vl.reshape(B, nq, tq)
        vl_min = vl_t.min(axis=-1)
        vl_max = vl_t.max(axis=-1)
        last_tile = jnp.maximum((vl_max + tk - 1) // tk - 1, 0)
        vl_info = jnp.stack([vl_min, vl_max, last_tile], axis=0)
        vl_info = vl_info.reshape(3, B * nq).astype(jnp.int32)
        vl3 = vl.reshape(B, Qp, 1)

        def kv_index_map(b, qi, ki, info):
            # Clamp past the last valid K tile -> repeated block index, no dead DMAs.
            return (b, jnp.minimum(ki, info[2, b * nq + qi]), 0)

        out = pl.pallas_call(
            functools.partial(_flash_kernel_masked, scale_log2e=scale_log2e,
                              k_tile=tk, nq=nq),
            out_shape=jax.ShapeDtypeStruct((B, Qp, V), queries.dtype),
            grid_spec=pltpu.PrefetchScalarGridSpec(
                num_scalar_prefetch=1,
                grid=(B, nq, nk),
                in_specs=[
                    pl.BlockSpec((1, tq, D), lambda b, qi, ki, info: (b, qi, 0)),
                    pl.BlockSpec((1, tk, D), kv_index_map),
                    pl.BlockSpec((1, tk, V), kv_index_map),
                    pl.BlockSpec((1, tq, 1), lambda b, qi, ki, info: (b, qi, 0)),
                ],
                out_specs=pl.BlockSpec((1, tq, V), lambda b, qi, ki, info: (b, qi, 0)),
                scratch_shapes=scratch),
            compiler_params=compiler_params,
        )(vl_info, queries, keys, values, vl3)

    if Qp != Q:
        out = out[:, :Q, :]

    if not return_weights:
        return out

    # Compat path only (torch module stashes self.attention_weights); off by default to
    # avoid the O(B*Q*K) f32 HBM writeback and the full-K block.
    if vl is None:
        vl = jnp.full((B, Qp), K, dtype=jnp.int32)
    weights = pl.pallas_call(
        functools.partial(_attn_weights_kernel, scale_log2e=scale_log2e),
        out_shape=jax.ShapeDtypeStruct((B, Qp, Kp), jnp.float32),
        grid_spec=pltpu.PrefetchScalarGridSpec(
            num_scalar_prefetch=0,
            grid=(B, nq),
            in_specs=[
                pl.BlockSpec((1, tq, D), lambda b, qi: (b, qi, 0)),
                pl.BlockSpec((1, Kp, D), lambda b, qi: (b, 0, 0)),
                pl.BlockSpec((1, tq, 1), lambda b, qi: (b, qi, 0)),
            ],
            out_specs=pl.BlockSpec((1, tq, Kp), lambda b, qi: (b, qi, 0)),
        ),
        compiler_params=pltpu.CompilerParams(
            dimension_semantics=("parallel", "parallel"),
            vmem_limit_bytes=32 * 1024 * 1024),
    )(queries, keys, vl.reshape(B, Qp, 1))
    if Qp != Q or Kp != K:
        weights = weights[:, :Q, :K]
    return out, weights


def _reference(queries, keys, values, valid_lens):
    """Pure-JAX reference mirroring the PyTorch module."""
    d = queries.shape[-1]
    scores = jnp.einsum("bqd,bkd->bqk", queries, keys) / math.sqrt(d)
    if valid_lens is not None:
        B, Q, K = scores.shape
        vl = jnp.asarray(valid_lens)
        if vl.ndim == 1:
            vl = jnp.broadcast_to(vl[:, None], (B, Q))
        mask = jnp.arange(K)[None, None, :] < vl[:, :, None]
        scores = jnp.where(mask, scores, -jnp.inf)
    w = jax.nn.softmax(scores, axis=-1)
    return jnp.einsum("bqk,bkv->bqv", w, values), w


if __name__ == "__main__":
    key = jax.random.PRNGKey(0)
    TOL = dict(atol=2e-2, rtol=2e-2)   # bf16 MXU matmuls vs. the f32 reference

    # --- small demo shapes (d2l demo scale) ---
    B, Q, K, D, V = 2, 8, 8, 32, 16
    kq, kk, kv = jax.random.split(key, 3)
    queries = jax.random.normal(kq, (B, Q, D), dtype=jnp.float32)
    keys = jax.random.normal(kk, (B, K, D), dtype=jnp.float32)
    values = jax.random.normal(kv, (B, K, V), dtype=jnp.float32)
    valid_lens = jnp.array([3, 6], dtype=jnp.int32)

    out, attn_w = dot_product_attention(queries, keys, values, valid_lens,
                                        return_weights=True)
    jax.block_until_ready(out)
    jax.block_until_ready(attn_w)
    ref_out, ref_w = _reference(queries, keys, values, valid_lens)
    assert jnp.allclose(out, ref_out, **TOL), "1-D valid_lens output mismatch"
    assert jnp.allclose(attn_w, ref_w, **TOL), "attention weights mismatch"

    # 2-D (per-query) valid_lens and the mask-free (None) path
    vl2d = jnp.array([[1, 2, 3, 4, 5, 6, 7, 8],
                      [8, 7, 6, 5, 4, 3, 2, 1]], dtype=jnp.int32)
    out2 = dot_product_attention(queries, keys, values, vl2d)
    ref2, _ = _reference(queries, keys, values, vl2d)
    assert jnp.allclose(jax.block_until_ready(out2), ref2, **TOL)

    out3 = dot_product_attention(queries, keys, values, None)
    ref3, _ = _reference(queries, keys, values, None)
    assert jnp.allclose(jax.block_until_ready(out3), ref3, **TOL)

    # --- tiled path: multi-K-tile online softmax, fully-valid fast path + masked tiles ---
    B2, Q2, K2, D2, V2 = 2, 256, 1024, 64, 64
    kq2, kk2, kv2 = jax.random.split(jax.random.PRNGKey(1), 3)
    q2 = jax.random.normal(kq2, (B2, Q2, D2), dtype=jnp.float32)
    k2 = jax.random.normal(kk2, (B2, K2, D2), dtype=jnp.float32)
    v2 = jax.random.normal(kv2, (B2, K2, V2), dtype=jnp.float32)
    vl_big = jnp.array([700, 1024], dtype=jnp.int32)
    out_big = dot_product_attention(q2, k2, v2, vl_big)
    ref_big, _ = _reference(q2, k2, v2, vl_big)
    assert jnp.allclose(jax.block_until_ready(out_big), ref_big, **TOL)

    # --- ragged / non-divisible shapes: exercises Q and K tail padding (no full-K block) ---
    B3, Q3, K3, D3, V3 = 1, 140, 200, 32, 48
    kq3, kk3, kv3 = jax.random.split(jax.random.PRNGKey(2), 3)
    q3 = jax.random.normal(kq3, (B3, Q3, D3), dtype=jnp.float32)
    k3 = jax.random.normal(kk3, (B3, K3, D3), dtype=jnp.float32)
    v3 = jax.random.normal(kv3, (B3, K3, V3), dtype=jnp.float32)
    vl_r = jnp.array([150], dtype=jnp.int32)
    out_pad = dot_product_attention(q3, k3, v3, vl_r)
    ref_pad, _ = _reference(q3, k3, v3, vl_r)
    assert jnp.allclose(jax.block_until_ready(out_pad), ref_pad, **TOL)

    out_pad_none = dot_product_attention(q3, k3, v3, None)   # K padding forces mask path
    ref_pad_none, _ = _reference(q3, k3, v3, None)
    assert jnp.allclose(jax.block_until_ready(out_pad_none), ref_pad_none, **TOL)

    print("KERNEL_OK")
</pallas_src>

<mosaic_0001>
module attributes {stable_mosaic.version = 11 : i64} {
  func.func @_flash_kernel_masked(%arg0: i32, %arg1: i32, %arg2: i32, %arg3: memref<3x2xi32, #tpu.memory_space<smem>>, %arg4: memref<1x8x32xf32, #tpu.memory_space<vmem>>, %arg5: memref<1x8x32xf32, #tpu.memory_space<vmem>>, %arg6: memref<1x8x16xf32, #tpu.memory_space<vmem>>, %arg7: memref<1x8x1xi32, #tpu.memory_space<vmem>>, %arg8: memref<1x8x16xf32, #tpu.memory_space<vmem>>, %arg9: memref<8x1xf32, #tpu.memory_space<vmem>>, %arg10: memref<8x1xf32, #tpu.memory_space<vmem>>, %arg11: memref<8x16xf32, #tpu.memory_space<vmem>>) attributes {dimension_semantics = [#tpu.dimension_semantics<parallel>, #tpu.dimension_semantics<parallel>, #tpu.dimension_semantics<arbitrary>], iteration_bounds = array<i64: 2, 1, 1>, scalar_prefetch = 1 : i64, scratch_operands = 3 : i64, tpu.core_type = #tpu.core_type<tc>, window_params = [{transform_indices = @transform_0, window_bounds = array<i64: 1, 8, 32>}, {transform_indices = @transform_1, window_bounds = array<i64: 1, 8, 32>}, {transform_indices = @transform_2, window_bounds = array<i64: 1, 8, 16>}, {transform_indices = @transform_3, window_bounds = array<i64: 1, 8, 1>}, {transform_indices = @transform_4, window_bounds = array<i64: 1, 8, 16>}]} {
    %c0_i32 = arith.constant 0 : i32
    %0 = arith.cmpi eq, %arg2, %c0_i32 : i32
    %1 = arith.extui %0 : i1 to i32
    %c0_i32_0 = arith.constant 0 : i32
    %2 = arith.cmpi ne, %1, %c0_i32_0 : i32
    scf.if %2 {
      %cst = arith.constant 0xFF800000 : f32
      %16 = vector.broadcast %cst : f32 to vector<8x1xf32>
      %c0_4 = arith.constant 0 : index
      %c0_5 = arith.constant 0 : index
      %17 = vector.load %arg9[%c0_4, %c0_5] : memref<8x1xf32, #tpu.memory_space<vmem>>, vector<8x1xf32>
      tpu.vector_store %arg9[%c0_4, %c0_5], %16 {strides = array<i32>} : memref<8x1xf32, #tpu.memory_space<vmem>>, vector<8x1xf32>,
      %cst_6 = arith.constant 0.000000e+00 : f32
      %18 = vector.broadcast %cst_6 : f32 to vector<8x1xf32>
      %c0_7 = arith.constant 0 : index
      %c0_8 = arith.constant 0 : index
      %19 = vector.load %arg10[%c0_7, %c0_8] : memref<8x1xf32, #tpu.memory_space<vmem>>, vector<8x1xf32>
      tpu.vector_store %arg10[%c0_7, %c0_8], %18 {strides = array<i32>} : memref<8x1xf32, #tpu.memory_space<vmem>>, vector<8x1xf32>,
      %cst_9 = arith.constant 0.000000e+00 : f32
      %20 = vector.broadcast %cst_9 : f32 to vector<8x16xf32>
      %c0_10 = arith.constant 0 : index
      %c0_11 = arith.constant 0 : index
      %21 = vector.load %arg11[%c0_10, %c0_11] : memref<8x16xf32, #tpu.memory_space<vmem>>, vector<8x16xf32>
      tpu.vector_store %arg11[%c0_10, %c0_11], %20 {strides = array<i32>} : memref<8x16xf32, #tpu.memory_space<vmem>>, vector<8x16xf32>,
    } else {
    }
    %c1_i32 = arith.constant 1 : i32
    %3 = arith.muli %arg0, %c1_i32 : i32
    %4 = arith.addi %3, %arg1 : i32
    %c0 = arith.constant 0 : index
    %5 = arith.index_cast %4 : i32 to index
    %6 = memref.load %arg3[%c0, %5] : memref<3x2xi32, #tpu.memory_space<smem>>
    %c1 = arith.constant 1 : index
    %7 = arith.index_cast %4 : i32 to index
    %8 = memref.load %arg3[%c1, %7] : memref<3x2xi32, #tpu.memory_space<smem>>
    %c8_i32 = arith.constant 8 : i32
    %9 = arith.muli %arg2, %c8_i32 : i32
    %10 = arith.cmpi slt, %9, %8 : i32
    %11 = arith.extui %10 : i1 to i32
    %c0_i32_1 = arith.constant 0 : i32
    %12 = arith.cmpi ne, %11, %c0_i32_1 : i32
    scf.if %12 {
      %c0_4 = arith.constant 0 : index
      %c0_5 = arith.constant 0 : index
      %c0_6 = arith.constant 0 : index
      %16 = vector.load %arg4[%c0_4, %c0_5, %c0_6] : memref<1x8x32xf32, #tpu.memory_space<vmem>>, vector<1x8x32xf32>
      %17 = vector.shape_cast %16 : vector<1x8x32xf32> to vector<8x32xf32>
      %cst = arith.constant 0.255034864 : f32
      %18 = vector.broadcast %cst : f32 to vector<8x32xf32>
      %19 = arith.mulf %17, %18 : vector<8x32xf32>
      %20 = arith.truncf %19 : vector<8x32xf32> to vector<8x32xbf16>
      %c0_7 = arith.constant 0 : index
      %c0_8 = arith.constant 0 : index
      %c0_9 = arith.constant 0 : index
      %21 = vector.load %arg5[%c0_7, %c0_8, %c0_9] : memref<1x8x32xf32, #tpu.memory_space<vmem>>, vector<1x8x32xf32>
      %22 = vector.shape_cast %21 : vector<1x8x32xf32> to vector<8x32xf32>
      %23 = arith.truncf %22 : vector<8x32xf32> to vector<8x32xbf16>
      %cst_10 = arith.constant dense<0.000000e+00> : vector<8x8xf32>
      %24 = tpu.matmul %20, %23, %cst_10 {dimension_numbers = #tpu.dot_dimension_numbers<[1], [1], [0], [0], [0, 0, 1, 0], [], []>} : vector<8x32xbf16>, vector<8x32xbf16>, vector<8x8xf32> -> vector<8x8xf32>
      %c0_11 = arith.constant 0 : index
      %c0_12 = arith.constant 0 : index
      %c0_13 = arith.constant 0 : index
      %25 = vector.load %arg6[%c0_11, %c0_12, %c0_13] : memref<1x8x16xf32, #tpu.memory_space<vmem>>, vector<1x8x16xf32>
      %26 = vector.shape_cast %25 : vector<1x8x16xf32> to vector<8x16xf32>
      %c8_i32_14 = arith.constant 8 : i32
      %27 = arith.addi %9, %c8_i32_14 : i32
      %28 = arith.cmpi sge, %6, %27 : i32
      %29 = arith.extui %28 : i1 to i32
      %c0_i32_15 = arith.constant 0 : i32
      %30 = arith.cmpi ne, %29, %c0_i32_15 : i32
      scf.if %30 {
        %c0_18 = arith.constant 0 : index
        %c0_19 = arith.constant 0 : index
        %35 = vector.load %arg9[%c0_18, %c0_19] : memref<8x1xf32, #tpu.memory_space<vmem>>, vector<8x1xf32>
        %cst_20 = arith.constant dense<0xFF800000> : vector<8xf32>
        %36 = vector.multi_reduction <maximumf>, %24, %cst_20 [1] : vector<8x8xf32> to vector<8xf32>
        %37 = vector.shape_cast %36 : vector<8xf32> to vector<8x1xf32>
        %38 = arith.maximumf %35, %37 : vector<8x1xf32>
        %39 = arith.subf %35, %38 : vector<8x1xf32>
        %40 = math.exp2 %39 : vector<8x1xf32>
        %41 = vector.broadcast %38 : vector<8x1xf32> to vector<8x8xf32>
        %42 = arith.subf %24, %41 : vector<8x8xf32>
        %43 = math.exp2 %42 : vector<8x8xf32>
        %c0_21 = arith.constant 0 : index
        %c0_22 = arith.constant 0 : index
        %44 = vector.load %arg10[%c0_21, %c0_22] : memref<8x1xf32, #tpu.memory_space<vmem>>, vector<8x1xf32>
        %45 = arith.mulf %40, %44 : vector<8x1xf32>
        %cst_23 = arith.constant dense<0.000000e+00> : vector<8xf32>
        %46 = vector.multi_reduction <add>, %43, %cst_23 [1] : vector<8x8xf32> to vector<8xf32>
        %47 = vector.shape_cast %46 : vector<8xf32> to vector<8x1xf32>
        %48 = arith.addf %45, %47 : vector<8x1xf32>
        %c0_24 = arith.constant 0 : index
        %c0_25 = arith.constant 0 : index
        %49 = vector.load %arg10[%c0_24, %c0_25] : memref<8x1xf32, #tpu.memory_space<vmem>>, vector<8x1xf32>
        tpu.vector_store %arg10[%c0_24, %c0_25], %48 {strides = array<i32>} : memref<8x1xf32, #tpu.memory_space<vmem>>, vector<8x1xf32>,
        %c0_26 = arith.constant 0 : index
        %c0_27 = arith.constant 0 : index
        %50 = vector.load %arg11[%c0_26, %c0_27] : memref<8x16xf32, #tpu.memory_space<vmem>>, vector<8x16xf32>
        %51 = vector.broadcast %40 : vector<8x1xf32> to vector<8x16xf32>
        %52 = arith.mulf %51, %50 : vector<8x16xf32>
        %53 = arith.truncf %43 : vector<8x8xf32> to vector<8x8xbf16>
        %54 = arith.truncf %26 : vector<8x16xf32> to vector<8x16xbf16>
        %cst_28 = arith.constant dense<0.000000e+00> : vector<8x16xf32>
        %55 = tpu.matmul %53, %54, %cst_28 {dimension_numbers = #tpu.dot_dimension_numbers<[1], [0], [0], [1], [0, 0, 1, 1], [], []>} : vector<8x8xbf16>, vector<8x16xbf16>, vector<8x16xf32> -> vector<8x16xf32>
        %56 = arith.addf %52, %55 : vector<8x16xf32>
        %c0_29 = arith.constant 0 : index
        %c0_30 = arith.constant 0 : index
        %57 = vector.load %arg11[%c0_29, %c0_30] : memref<8x16xf32, #tpu.memory_space<vmem>>, vector<8x16xf32>
        tpu.vector_store %arg11[%c0_29, %c0_30], %56 {strides = array<i32>} : memref<8x16xf32, #tpu.memory_space<vmem>>, vector<8x16xf32>,
        %c0_31 = arith.constant 0 : index
        %c0_32 = arith.constant 0 : index
        %58 = vector.load %arg9[%c0_31, %c0_32] : memref<8x1xf32, #tpu.memory_space<vmem>>, vector<8x1xf32>
        tpu.vector_store %arg9[%c0_31, %c0_32], %38 {strides = array<i32>} : memref<8x1xf32, #tpu.memory_space<vmem>>, vector<8x1xf32>,
      } else {
      }
      %c8_i32_16 = arith.constant 8 : i32
      %31 = arith.addi %9, %c8_i32_16 : i32
      %32 = arith.cmpi slt, %6, %31 : i32
      %33 = arith.extui %32 : i1 to i32
      %c0_i32_17 = arith.constant 0 : i32
      %34 = arith.cmpi ne, %33, %c0_i32_17 : i32
      scf.if %34 {
        %c0_18 = arith.constant 0 : index
        %c0_19 = arith.constant 0 : index
        %c0_20 = arith.constant 0 : index
        %35 = vector.load %arg7[%c0_18, %c0_19, %c0_20] : memref<1x8x1xi32, #tpu.memory_space<vmem>>, vector<1x8x1xi32>
        %36 = vector.shape_cast %35 : vector<1x8x1xi32> to vector<8x1xi32>
        %37 = vector.broadcast %9 : i32 to vector<8x1xi32>
        %38 = arith.subi %36, %37 : vector<8x1xi32>
        %39 = tpu.iota {dimensions = array<i32: 1>} : vector<8x8xi32>
        %40 = vector.broadcast %38 : vector<8x1xi32> to vector<8x8xi32>
        %41 = arith.cmpi slt, %39, %40 : vector<8x8xi32>
        %cst_21 = arith.constant -1.000000e+30 : f32
        %42 = vector.broadcast %cst_21 : f32 to vector<8x8xf32>
        %43 = arith.select %41, %24, %42 : vector<8x8xi1>, vector<8x8xf32>
        %c0_22 = arith.constant 0 : index
        %c0_23 = arith.constant 0 : index
        %44 = vector.load %arg9[%c0_22, %c0_23] : memref<8x1xf32, #tpu.memory_space<vmem>>, vector<8x1xf32>
        %cst_24 = arith.constant dense<0xFF800000> : vector<8xf32>
        %45 = vector.multi_reduction <maximumf>, %43, %cst_24 [1] : vector<8x8xf32> to vector<8xf32>
        %46 = vector.shape_cast %45 : vector<8xf32> to vector<8x1xf32>
        %47 = arith.maximumf %44, %46 : vector<8x1xf32>
        %48 = arith.subf %44, %47 : vector<8x1xf32>
        %49 = math.exp2 %48 : vector<8x1xf32>
        %50 = vector.broadcast %47 : vector<8x1xf32> to vector<8x8xf32>
        %51 = arith.subf %43, %50 : vector<8x8xf32>
        %52 = math.exp2 %51 : vector<8x8xf32>
        %cst_25 = arith.constant 0.000000e+00 : f32
        %53 = vector.broadcast %cst_25 : f32 to vector<8x8xf32>
        %54 = arith.select %41, %52, %53 : vector<8x8xi1>, vector<8x8xf32>
        %c0_26 = arith.constant 0 : index
        %c0_27 = arith.constant 0 : index
        %55 = vector.load %arg10[%c0_26, %c0_27] : memref<8x1xf32, #tpu.memory_space<vmem>>, vector<8x1xf32>
        %56 = arith.mulf %49, %55 : vector<8x1xf32>
        %cst_28 = arith.constant dense<0.000000e+00> : vector<8xf32>
        %57 = vector.multi_reduction <add>, %54, %cst_28 [1] : vector<8x8xf32> to vector<8xf32>
        %58 = vector.shape_cast %57 : vector<8xf32> to vector<8x1xf32>
        %59 = arith.addf %56, %58 : vector<8x1xf32>
        %c0_29 = arith.constant 0 : index
        %c0_30 = arith.constant 0 : index
        %60 = vector.load %arg10[%c0_29, %c0_30] : memref<8x1xf32, #tpu.memory_space<vmem>>, vector<8x1xf32>
        tpu.vector_store %arg10[%c0_29, %c0_30], %59 {strides = array<i32>} : memref<8x1xf32, #tpu.memory_space<vmem>>, vector<8x1xf32>,
        %c0_31 = arith.constant 0 : index
        %c0_32 = arith.constant 0 : index
        %61 = vector.load %arg11[%c0_31, %c0_32] : memref<8x16xf32, #tpu.memory_space<vmem>>, vector<8x16xf32>
        %62 = vector.broadcast %49 : vector<8x1xf32> to vector<8x16xf32>
        %63 = arith.mulf %62, %61 : vector<8x16xf32>
        %64 = arith.truncf %54 : vector<8x8xf32> to vector<8x8xbf16>
        %65 = arith.truncf %26 : vector<8x16xf32> to vector<8x16xbf16>
        %cst_33 = arith.constant dense<0.000000e+00> : vector<8x16xf32>
        %66 = tpu.matmul %64, %65, %cst_33 {dimension_numbers = #tpu.dot_dimension_numbers<[1], [0], [0], [1], [0, 0, 1, 1], [], []>} : vector<8x8xbf16>, vector<8x16xbf16>, vector<8x16xf32> -> vector<8x16xf32>
        %67 = arith.addf %63, %66 : vector<8x16xf32>
        %c0_34 = arith.constant 0 : index
        %c0_35 = arith.constant 0 : index
        %68 = vector.load %arg11[%c0_34, %c0_35] : memref<8x16xf32, #tpu.memory_space<vmem>>, vector<8x16xf32>
        tpu.vector_store %arg11[%c0_34, %c0_35], %67 {strides = array<i32>} : memref<8x16xf32, #tpu.memory_space<vmem>>, vector<8x16xf32>,
        %c0_36 = arith.constant 0 : index
        %c0_37 = arith.constant 0 : index
        %69 = vector.load %arg9[%c0_36, %c0_37] : memref<8x1xf32, #tpu.memory_space<vmem>>, vector<8x1xf32>
        tpu.vector_store %arg9[%c0_36, %c0_37], %47 {strides = array<i32>} : memref<8x1xf32, #tpu.memory_space<vmem>>, vector<8x1xf32>,
      } else {
      }
    } else {
    }
    %c0_i32_2 = arith.constant 0 : i32
    %13 = arith.cmpi eq, %arg2, %c0_i32_2 : i32
    %14 = arith.extui %13 : i1 to i32
    %c0_i32_3 = arith.constant 0 : i32
    %15 = arith.cmpi ne, %14, %c0_i32_3 : i32
    scf.if %15 {
      %c0_4 = arith.constant 0 : index
      %c0_5 = arith.constant 0 : index
      %16 = vector.load %arg10[%c0_4, %c0_5] : memref<8x1xf32, #tpu.memory_space<vmem>>, vector<8x1xf32>
      %17 = tpu.reciprocal %16 {approx = true} : vector<8x1xf32> -> vector<8x1xf32>
      %18 = arith.mulf %16, %17 : vector<8x1xf32>
      %cst = arith.constant 2.000000e+00 : f32
      %19 = vector.broadcast %cst : f32 to vector<8x1xf32>
      %20 = arith.subf %19, %18 : vector<8x1xf32>
      %21 = arith.mulf %17, %20 : vector<8x1xf32>
      %c0_6 = arith.constant 0 : index
      %c0_7 = arith.constant 0 : index
      %22 = vector.load %arg11[%c0_6, %c0_7] : memref<8x16xf32, #tpu.memory_space<vmem>>, vector<8x16xf32>
      %23 = vector.broadcast %21 : vector<8x1xf32> to vector<8x16xf32>
      %24 = arith.mulf %22, %23 : vector<8x16xf32>
      %c0_8 = arith.constant 0 : index
      %c0_9 = arith.constant 0 : index
      %c0_10 = arith.constant 0 : index
      %25 = vector.load %arg8[%c0_8, %c0_9, %c0_10] : memref<1x8x16xf32, #tpu.memory_space<vmem>>, vector<1x8x16xf32>
      %26 = vector.shape_cast %25 : vector<1x8x16xf32> to vector<8x16xf32>
      %27 = vector.shape_cast %24 : vector<8x16xf32> to vector<1x8x16xf32>
      tpu.vector_store %arg8[%c0_8, %c0_9, %c0_10], %27 {strides = array<i32>} : memref<1x8x16xf32, #tpu.memory_space<vmem>>, vector<1x8x16xf32>,
    } else {
    }
    return
  }
  func.func @transform_0(%arg0: i32, %arg1: i32, %arg2: i32, %arg3: memref<3x2xi32, #tpu.memory_space<smem>>) -> (i32, i32, i32) {
    %c0_i32 = arith.constant 0 : i32
    %c0_i32_0 = arith.constant 0 : i32
    return %arg0, %arg1, %c0_i32 : i32, i32, i32
  }
  func.func @transform_1(%arg0: i32, %arg1: i32, %arg2: i32, %arg3: memref<3x2xi32, #tpu.memory_space<smem>>) -> (i32, i32, i32) {
    %c1_i32 = arith.constant 1 : i32
    %0 = arith.muli %arg0, %c1_i32 : i32
    %1 = arith.addi %0, %arg1 : i32
    %c2 = arith.constant 2 : index
    %2 = arith.index_cast %1 : i32 to index
    %3 = memref.load %arg3[%c2, %2] : memref<3x2xi32, #tpu.memory_space<smem>>
    %4 = arith.minsi %arg2, %3 : i32
    %c0_i32 = arith.constant 0 : i32
    %c0_i32_0 = arith.constant 0 : i32
    return %arg0, %4, %c0_i32 : i32, i32, i32
  }
  func.func @transform_2(%arg0: i32, %arg1: i32, %arg2: i32, %arg3: memref<3x2xi32, #tpu.memory_space<smem>>) -> (i32, i32, i32) {
    %c1_i32 = arith.constant 1 : i32
    %0 = arith.muli %arg0, %c1_i32 : i32
    %1 = arith.addi %0, %arg1 : i32
    %c2 = arith.constant 2 : index
    %2 = arith.index_cast %1 : i32 to index
    %3 = memref.load %arg3[%c2, %2] : memref<3x2xi32, #tpu.memory_space<smem>>
    %4 = arith.minsi %arg2, %3 : i32
    %c0_i32 = arith.constant 0 : i32
    %c0_i32_0 = arith.constant 0 : i32
    return %arg0, %4, %c0_i32 : i32, i32, i32
  }
  func.func @transform_3(%arg0: i32, %arg1: i32, %arg2: i32, %arg3: memref<3x2xi32, #tpu.memory_space<smem>>) -> (i32, i32, i32) {
    %c0_i32 = arith.constant 0 : i32
    %c0_i32_0 = arith.constant 0 : i32
    return %arg0, %arg1, %c0_i32 : i32, i32, i32
  }
  func.func @transform_4(%arg0: i32, %arg1: i32, %arg2: i32, %arg3: memref<3x2xi32, #tpu.memory_space<smem>>) -> (i32, i32, i32) {
    %c0_i32 = arith.constant 0 : i32
    %c0_i32_0 = arith.constant 0 : i32
    return %arg0, %arg1, %c0_i32 : i32, i32, i32
  }
}

</mosaic_0001>

<llo_original>
// kernel: tpu_custom_call.1
$region0: #{tpu_custom_call.1}
  #allocation0 [shape = 'u32[]', space=smem, size = 0x4, offset = 0x4, fixed_abs, tag = 'smem constant byte address 0x4 - core index']
  #allocation1 [shape = 'u32[72,128]{1,0:T(1,128)}', space=vmem, size = 0x9000, scoped, tag = 'internal scratch']
  #allocation2 [shape = 'f32[8,1]{1,0:T(8,128)}', space=vmem, size = 0x1000, scoped, tag = 'scratch operand']
  #allocation3 [shape = 'f32[8,1]{1,0:T(8,128)}', space=vmem, size = 0x1000, scoped, tag = 'scratch operand']
  #allocation4 [shape = 'f32[8,16]{1,0:T(8,128)}', space=vmem, size = 0x1000, scoped, tag = 'scratch operand']
  #allocation5 [shape = 's32[1]{0}', space=sflag, size = 0x4, scoped, tag = 'scoped memory for tpu_custom_call.1']
  #allocation6 [shape = 'u8[2048]{0}', space=smem, size = 0x800, scoped, tag = 'prefetched SMEM operand 0']
  %s0 = inlined_call_operand.vmem [shape: s32[3,2], index: 0, kind: input, shape index: {}]
  %s1 = inlined_call_operand.vmem [shape: f32[2,8,32], index: 1, kind: input, shape index: {}]
  %s2 = inlined_call_operand.hbm [shape: f32[2,8,32], index: 2, kind: input, shape index: {}]
  %s3 = inlined_call_operand.hbm [shape: f32[2,8,16], index: 3, kind: input, shape index: {}]
  %s4 = inlined_call_operand.vmem [shape: s32[2,8,1], index: 4, kind: input, shape index: {}]
  %s5 = inlined_call_operand.hbm [shape: f32[2,8,16], index: 5, kind: output, shape index: {}]
  %s6 = sld [smem:[#allocation0]]
  $region77: #{tpu_custom_call.1} parent=0
    _
  %s8 = ssub.s32 1, %s6
  %s9 = scalar_select 0, %s8, %s6
  %s11 = sshll.u32 %s0, 4
  %s12 = int_to_ptr.vmem [resolvable:$true] %s11
  %14 = dma.vmem_to_smem %s12, 64, [#allocation6], [#allocation5]
  %16 = dma.done [#allocation5], 64
  %17 = sfence
  $region1: #{tpu_custom_call.1} parent=0
    #allocation7 [shape = 'u8[8192]{0}', space=vmem, size = 0x2000, scoped, tag = 'input window, operand 2']
    #allocation8 [shape = 's32[2]{0}', space=sflag, size = 0x8, scoped, tag = 'scoped memory for tpu_custom_call.1']
    #allocation9 [shape = 's32[2]{0}', space=sflag, size = 0x8, scoped, tag = 'scoped memory for tpu_custom_call.1']
    #allocation10 [shape = 'u8[8192]{0}', space=vmem, size = 0x2000, scoped, tag = 'input window, operand 3']
    #allocation11 [shape = 's32[2]{0}', space=sflag, size = 0x8, scoped, tag = 'scoped memory for tpu_custom_call.1']
    #allocation12 [shape = 'u8[8192]{0}', space=vmem, size = 0x2000, scoped, tag = 'output window, operand 0']
    %18 = vsyncpa [#allocation8], 0
    %s19 = scalar_lea.sflag [#allocation8], 1
    %20 = vsyncpa %s19, 0
    %21 = vsyncpa [#allocation11], 0
    %s22 = scalar_lea.sflag [#allocation11], 1
    %23 = vsyncpa %s22, 0
    %24 = vsyncpa [#allocation9], 0
    %s25 = scalar_lea.sflag [#allocation9], 1
    %26 = vsyncpa %s25, 0
    loop: start=0, step=1, limit=4
    $region2: #{tpu_custom_call.1} parent=1 // loop_pre_header
      _
    $region3: #{tpu_custom_call.1} parent=1 // loop_header
      %s28 = sphi 0, %s32
      %p29 = scmp.ge.s32.totalorder %s28, 4
      %s35 = sphi 0, %s54
      %s36 = sphi 0, %s50
      %s37 = sphi 0, %s46
      %s38 = sphi 0, %s35
      %s39 = sphi 0, %s36
      %s40 = sphi 0, %s37
      %s41 = sphi 0, %s38
      %s42 = sphi 0, %s39
      %s43 = sphi 0, %s40
      %s59 = sphi 0, %s61
      %s62 = sphi 0, %s59
      %s63 = sphi 0, %s62
      %s79 = sphi 0, %s63
      %s109 = sphi 0, %s111
      %s112 = sphi 0, %s109
      %s113 = sphi 0, %s112
      %s129 = sphi 0, %s113
      %s159 = sphi 0, %s161
      %s162 = sphi 0, %s159
      %s163 = sphi 0, %s162
      %s179 = sphi 0, %s163
      %s187 = sphi 0, %s189
      %s190 = sphi 0, %s187
      %s191 = sphi 0, %s190
      %s207 = sphi 0, %s191
      %s215 = sphi 0, %s217
      %s218 = sphi 0, %s215
      %s219 = sphi 0, %s218
      %s235 = sphi 0, %s219
    $region4: #{tpu_custom_call.1} parent=1 // loop_header_branch
      %31 = sbr.rel (%p29) target = $region8
    $region5: #{tpu_custom_call.1} parent=1 // loop_body
      %s33 = ssub.s32 %s28, 1
      %s34 = ssub.s32 %s28, 2
      %s44 = sadd.s32 1, %s37
      %p45 = scmp.ge.s32.totalorder %s44, 1
      %s46 = scalar_select %p45, 0, %s44
      %s47 = sadd.s32 1, %s36
      %s48 = scalar_select %p45, %s47, %s36
      %p49 = scmp.ge.s32.totalorder %s48, 1
      %s50 = scalar_select %p49, 0, %s48
      %s51 = sadd.s32 1, %s35
      %s52 = scalar_select %p49, %s51, %s35
      %p53 = scmp.ge.s32.totalorder %s52, 2
      %s54 = scalar_select %p53, 0, %s52
      %s55 = ssub.s32 %s35, %s54
      %s56 = ssub.s32 %s36, %s50
      %s57 = sor.u32 %s55, %s56
      %p58 = scmp.eq.s32.totalorder %s57, 0
      %s60 = sadd.s32 %s59, 1
      %s61 = scalar_select %p58, %s59, %s60
      %p64 = pneg %p58
      %p65 = scmp.eq.s32.totalorder %s28, 1
      %p66 = por %p64, %p65
      %p67 = scmp.ne.s32.totalorder %s59, %s62
      %p68 = scmp.eq.s32.totalorder %s28, 0
      %p69 = por %p67, %p68
      %p70 = scmp.ne.s32.totalorder %s59, %s62
      %p71 = scmp.eq.s32.totalorder %s33, 1
      %p72 = por %p70, %p71
      %p73 = scmp.ne.s32.totalorder %s62, %s63
      %p74 = scmp.eq.s32.totalorder %s33, 0
      %p75 = por %p73, %p74
      %p76 = scmp.ne.s32.totalorder %s62, %s63
      %p77 = scmp.eq.s32.totalorder %s34, 1
      %p78 = por %p76, %p77
      %p80 = scmp.ne.s32.totalorder %s63, %s79
      %p81 = scmp.eq.s32.totalorder %s34, 0
      %p82 = por %p80, %p81
      %s83 = sadd.s32 %s35, %s36
      %s84 = sshra.s32 %s83, 7
      %s85 = sand.u32 %s83, 127
      %s86 = sadd.s32 %s84, 2
      %s87 = smul.u32 %s86, 128
      %s88 = sshra.s32 %s83, 7
      %s89 = sand.u32 %s83, 127
      %s90 = sadd.s32 %s87, %s89
      %s91 = sld [smem:[#allocation6 + %s90]]
      %p92 = scmp.lt.s32.totalorder %s37, %s91
      %s93 = scalar_select %p92, %s37, %s91
      %s94 = sadd.s32 %s54, %s50
      %s95 = sshra.s32 %s94, 7
      %s96 = sand.u32 %s94, 127
      %s97 = sadd.s32 %s95, 2
      %s98 = smul.u32 %s97, 128
      %s99 = sshra.s32 %s94, 7
      %s100 = sand.u32 %s94, 127
      %s101 = sadd.s32 %s98, %s100
      %s102 = sld [smem:[#allocation6 + %s101]]
      %p103 = scmp.lt.s32.totalorder %s46, %s102
      %s104 = scalar_select %p103, %s46, %s102
      %s105 = ssub.s32 %s35, %s54
      %s106 = ssub.s32 %s93, %s104
      %s107 = sor.u32 %s105, %s106
      %p108 = scmp.eq.s32.totalorder %s107, 0
      %s110 = sadd.s32 %s109, 1
      %s111 = scalar_select %p108, %s109, %s110
      %p114 = pneg %p108
      %p115 = scmp.eq.s32.totalorder %s28, 1
      %p116 = por %p114, %p115
      %p117 = scmp.ne.s32.totalorder %s109, %s112
      %p118 = scmp.eq.s32.totalorder %s28, 0
      %p119 = por %p117, %p118
      %p120 = scmp.ne.s32.totalorder %s109, %s112
      %p121 = scmp.eq.s32.totalorder %s33, 1
      %p122 = por %p120, %p121
      %p123 = scmp.ne.s32.totalorder %s112, %s113
      %p124 = scmp.eq.s32.totalorder %s33, 0
      %p125 = por %p123, %p124
      %p126 = scmp.ne.s32.totalorder %s112, %s113
      %p127 = scmp.eq.s32.totalorder %s34, 1
      %p128 = por %p126, %p127
      %p130 = scmp.ne.s32.totalorder %s113, %s129
      %p131 = scmp.eq.s32.totalorder %s34, 0
      %p132 = por %p130, %p131
      %s133 = sadd.s32 %s35, %s36
      %s134 = sshra.s32 %s133, 7
      %s135 = sand.u32 %s133, 127
      %s136 = sadd.s32 %s134, 2
      %s137 = smul.u32 %s136, 128
      %s138 = sshra.s32 %s133, 7
      %s139 = sand.u32 %s133, 127
      %s140 = sadd.s32 %s137, %s139
      %s141 = sld [smem:[#allocation6 + %s140]]
      %p142 = scmp.lt.s32.totalorder %s37, %s141
      %s143 = scalar_select %p142, %s37, %s141
      %s144 = sadd.s32 %s54, %s50
      %s145 = sshra.s32 %s144, 7
      %s146 = sand.u32 %s144, 127
      %s147 = sadd.s32 %s145, 2
      %s148 = smul.u32 %s147, 128
      %s149 = sshra.s32 %s144, 7
      %s150 = sand.u32 %s144, 127
      %s151 = sadd.s32 %s148, %s150
      %s152 = sld [smem:[#allocation6 + %s151]]
      %p153 = scmp.lt.s32.totalorder %s46, %s152
      %s154 = scalar_select %p153, %s46, %s152
      %s155 = ssub.s32 %s35, %s54
      %s156 = ssub.s32 %s143, %s154
      %s157 = sor.u32 %s155, %s156
      %p158 = scmp.eq.s32.totalorder %s157, 0
      %s160 = sadd.s32 %s159, 1
      %s161 = scalar_select %p158, %s159, %s160
      %p164 = pneg %p158
      %p165 = scmp.eq.s32.totalorder %s28, 1
      %p166 = por %p164, %p165
      %p167 = scmp.ne.s32.totalorder %s159, %s162
      %p168 = scmp.eq.s32.totalorder %s28, 0
      %p169 = por %p167, %p168
      %p170 = scmp.ne.s32.totalorder %s159, %s162
      %p171 = scmp.eq.s32.totalorder %s33, 1
      %p172 = por %p170, %p171
      %p173 = scmp.ne.s32.totalorder %s162, %s163
      %p174 = scmp.eq.s32.totalorder %s33, 0
      %p175 = por %p173, %p174
      %p176 = scmp.ne.s32.totalorder %s162, %s163
      %p177 = scmp.eq.s32.totalorder %s34, 1
      %p178 = por %p176, %p177
      %p180 = scmp.ne.s32.totalorder %s163, %s179
      %p181 = scmp.eq.s32.totalorder %s34, 0
      %p182 = por %p180, %p181
      %s183 = ssub.s32 %s35, %s54
      %s184 = ssub.s32 %s36, %s50
      %s185 = sor.u32 %s183, %s184
      %p186 = scmp.eq.s32.totalorder %s185, 0
      %s188 = sadd.s32 %s187, 1
      %s189 = scalar_select %p186, %s187, %s188
      %p192 = pneg %p186
      %p193 = scmp.eq.s32.totalorder %s28, 1
      %p194 = por %p192, %p193
      %p195 = scmp.ne.s32.totalorder %s187, %s190
      %p196 = scmp.eq.s32.totalorder %s28, 0
      %p197 = por %p195, %p196
      %p198 = scmp.ne.s32.totalorder %s187, %s190
      %p199 = scmp.eq.s32.totalorder %s33, 1
      %p200 = por %p198, %p199
      %p201 = scmp.ne.s32.totalorder %s190, %s191
      %p202 = scmp.eq.s32.totalorder %s33, 0
      %p203 = por %p201, %p202
      %p204 = scmp.ne.s32.totalorder %s190, %s191
      %p205 = scmp.eq.s32.totalorder %s34, 1
      %p206 = por %p204, %p205
      %p208 = scmp.ne.s32.totalorder %s191, %s207
      %p209 = scmp.eq.s32.totalorder %s34, 0
      %p210 = por %p208, %p209
      %s211 = ssub.s32 %s35, %s54
      %s212 = ssub.s32 %s36, %s50
      %s213 = sor.u32 %s211, %s212
      %p214 = scmp.eq.s32.totalorder %s213, 0
      %s216 = sadd.s32 %s215, 1
      %s217 = scalar_select %p214, %s215, %s216
      %p220 = pneg %p214
      %p221 = scmp.eq.s32.totalorder %s28, 1
      %p222 = por %p220, %p221
      %p223 = scmp.ne.s32.totalorder %s215, %s218
      %p224 = scmp.eq.s32.totalorder %s28, 0
      %p225 = por %p223, %p224
      %p226 = scmp.ne.s32.totalorder %s215, %s218
      %p227 = scmp.eq.s32.totalorder %s33, 1
      %p228 = por %p226, %p227
      %p229 = scmp.ne.s32.totalorder %s218, %s219
      %p230 = scmp.eq.s32.totalorder %s33, 0
      %p231 = por %p229, %p230
      %p232 = scmp.ne.s32.totalorder %s218, %s219
      %p233 = scmp.eq.s32.totalorder %s34, 1
      %p234 = por %p232, %p233
      %p236 = scmp.ne.s32.totalorder %s219, %s235
      %p237 = scmp.eq.s32.totalorder %s34, 0
      %p238 = por %p236, %p237
      %p239 = scmp.le.s32.totalorder 1, %s28
      %p240 = scmp.lt.s32.totalorder %s28, 3
      %p241 = pnand %p239, %p240
      %p242 = pneg %p241
      // Predicated region
      $region9: #{tpu_custom_call.1} parent=5 // pred_check
        _
      $region10: #{tpu_custom_call.1} parent=5 // pred_check_branch
        %244 = sbr.rel (%p241) target = $region12
      $region11: #{tpu_custom_call.1} parent=5 // pred_region
        %s245 = ssub.s32 %s28, 1
      $region12: #{tpu_custom_call.1} parent=5 // pred_fallthru
        _
      %p246 = scmp.lt.s32.totalorder %s28, 2
      // Predicated region
      $region13: #{tpu_custom_call.1} parent=5 // pred_check
        %p247 = pneg %p246
      $region14: #{tpu_custom_call.1} parent=5 // pred_check_branch
        %249 = sbr.rel (%p247) target = $region16
      $region15: #{tpu_custom_call.1} parent=5 // pred_region
        // Predicated region
        $region17: #{tpu_custom_call.1} parent=15 // pred_check
          %p250 = pneg %p69
        $region18: #{tpu_custom_call.1} parent=15 // pred_check_branch
          %252 = sbr.rel (%p250) target = $region20
        $region19: #{tpu_custom_call.1} parent=15 // pred_region
          %p253 = scmp.lt.s32.totalorder %s35, 1
          %s254 = scalar_select %p253, %s35, 1
          %p255 = scmp.lt.s32.totalorder %s36, 0
          %s256 = scalar_select %p255, %s36, 0
          %s257 = sadd.s32 %s256, %s254
          %s258 = smul.addr %s257, 8
          %s259 = scalar_lea.vmem %s1, %s258
        $region20: #{tpu_custom_call.1} parent=15 // pred_fallthru
          _
        // Predicated region
        $region21: #{tpu_custom_call.1} parent=15 // pred_check
          %p260 = pneg %p119
        $region22: #{tpu_custom_call.1} parent=15 // pred_check_branch
          %262 = sbr.rel (%p260) target = $region24
        $region23: #{tpu_custom_call.1} parent=15 // pred_region
          %s263 = sand.u32 %s109, 1
          %s264 = scalar_lea.sflag [#allocation8], %s263
          %s265 = sand.u32 %s109, 1
          %s266 = smul.addr %s265, 8
          %s267 = scalar_lea.vmem [#allocation7], %s266
          %s268 = sadd.s32 %s35, %s36
          %s269 = sshra.s32 %s268, 7
          %s270 = sand.u32 %s268, 127
          %s271 = sadd.s32 %s269, 2
          %s272 = smul.u32 %s271, 128
          %s273 = sshra.s32 %s268, 7
          %s274 = sand.u32 %s268, 127
          %s275 = sadd.s32 %s272, %s274
          %s276 = sld [smem:[#allocation6 + %s275]]
          %p277 = scmp.lt.s32.totalorder %s37, %s276
          %s278 = scalar_select %p277, %s37, %s276
          %280 = vsyncadd %s264, 0
          %s281 = sadd.s32 %s278, %s35
          %s282 = smul.addr %s281, 8
          %s283 = scalar_lea.hbm %s2, %s282
          %s285 = sshll.u32 %s283, 4
          %s286 = int_to_ptr.hbm [resolvable:$true] %s285
          %s287 = sshll.u32 %s267, 4
          %s288 = int_to_ptr.vmem [resolvable:$true] %s287
          %290 = dma.hbm_to_vmem [thread:$0]  %s286, 128, %s288, %s264
        $region24: #{tpu_custom_call.1} parent=15 // pred_fallthru
          _
        // Predicated region
        $region25: #{tpu_custom_call.1} parent=15 // pred_check
          %p291 = pneg %p169
        $region26: #{tpu_custom_call.1} parent=15 // pred_check_branch
          %293 = sbr.rel (%p291) target = $region28
        $region27: #{tpu_custom_call.1} parent=15 // pred_region
          %s294 = sand.u32 %s159, 1
          %s295 = scalar_lea.sflag [#allocation11], %s294
          %s296 = sand.u32 %s159, 1
          %s297 = smul.addr %s296, 8
          %s298 = scalar_lea.vmem [#allocation10], %s297
          %s299 = sadd.s32 %s35, %s36
          %s300 = sshra.s32 %s299, 7
          %s301 = sand.u32 %s299, 127
          %s302 = sadd.s32 %s300, 2
          %s303 = smul.u32 %s302, 128
          %s304 = sshra.s32 %s299, 7
          %s305 = sand.u32 %s299, 127
          %s306 = sadd.s32 %s303, %s305
          %s307 = sld [smem:[#allocation6 + %s306]]
          %p308 = scmp.lt.s32.totalorder %s37, %s307
          %s309 = scalar_select %p308, %s37, %s307
          %311 = vsyncadd %s295, 0
          %s312 = sadd.s32 %s309, %s35
          %s313 = smul.addr %s312, 8
          %s314 = scalar_lea.hbm %s3, %s313
          %s316 = sshll.u32 %s314, 4
          %s317 = int_to_ptr.hbm [resolvable:$true] %s316
          %s318 = sshll.u32 %s298, 4
          %s319 = int_to_ptr.vmem [resolvable:$true] %s318
          %321 = dma.hbm_to_vmem [thread:$0]  %s317, 128, %s319, %s295
        $region28: #{tpu_custom_call.1} parent=15 // pred_fallthru
          _
        // Predicated region
        $region29: #{tpu_custom_call.1} parent=15 // pred_check
          %p322 = pneg %p197
        $region30: #{tpu_custom_call.1} parent=15 // pred_check_branch
          %324 = sbr.rel (%p322) target = $region32
        $region31: #{tpu_custom_call.1} parent=15 // pred_region
          %p325 = scmp.lt.s32.totalorder %s35, 1
          %s326 = scalar_select %p325, %s35, 1
          %p327 = scmp.lt.s32.totalorder %s36, 0
          %s328 = scalar_select %p327, %s36, 0
          %s329 = sadd.s32 %s328, %s326
          %s330 = smul.addr %s329, 8
          %s331 = scalar_lea.vmem %s4, %s330
        $region32: #{tpu_custom_call.1} parent=15 // pred_fallthru
          _
      $region16: #{tpu_custom_call.1} parent=5 // pred_fallthru
        _
      %p332 = scmp.le.s32.totalorder 1, %s28
      %p333 = scmp.lt.s32.totalorder %s28, 3
      %p334 = pnand %p332, %p333
      %p335 = pneg %p334
      // Predicated region
      $region33: #{tpu_custom_call.1} parent=5 // pred_check
        _
      $region34: #{tpu_custom_call.1} parent=5 // pred_check_branch
        %337 = sbr.rel (%p334) target = $region36
      $region35: #{tpu_custom_call.1} parent=5 // pred_region
        %s338 = ssub.s32 %s28, 1
        %s339 = sand.u32 %s112, 1
        %s340 = scalar_lea.sflag [#allocation8], %s339
        %s341 = sand.u32 %s112, 1
        %s342 = smul.addr %s341, 8
        %s343 = scalar_lea.vmem [#allocation7], %s342
        // Predicated region
        $region37: #{tpu_custom_call.1} parent=35 // pred_check
          %p344 = pneg %p125
        $region38: #{tpu_custom_call.1} parent=35 // pred_check_branch
          %346 = sbr.rel (%p344) target = $region40
        $region39: #{tpu_custom_call.1} parent=35 // pred_region
          %348 = dma.done %s340, 128
        $region40: #{tpu_custom_call.1} parent=35 // pred_fallthru
          _
        %s349 = sand.u32 %s162, 1
        %s350 = scalar_lea.sflag [#allocation11], %s349
        %s351 = sand.u32 %s162, 1
        %s352 = smul.addr %s351, 8
        %s353 = scalar_lea.vmem [#allocation10], %s352
        // Predicated region
        $region41: #{tpu_custom_call.1} parent=35 // pred_check
          %p354 = pneg %p175
        $region42: #{tpu_custom_call.1} parent=35 // pred_check_branch
          %356 = sbr.rel (%p354) target = $region44
        $region43: #{tpu_custom_call.1} parent=35 // pred_region
          %358 = dma.done %s350, 128
        $region44: #{tpu_custom_call.1} parent=35 // pred_fallthru
          _
        %p359 = scmp.lt.s32.totalorder %s38, 1
        %s360 = scalar_select %p359, %s38, 1
        %p361 = scmp.lt.s32.totalorder %s39, 0
        %s362 = scalar_select %p361, %s39, 0
        %s363 = sadd.s32 %s362, %s360
        %s364 = smul.addr %s363, 8
        %s365 = scalar_lea.vmem %s1, %s364
        %p366 = pneg %p75
        %p367 = pneg %p72
        %s368 = sand.u32 %s112, 1
        %s369 = scalar_lea.sflag [#allocation8], %s368
        %s370 = sand.u32 %s112, 1
        %s371 = smul.addr %s370, 8
        %s372 = scalar_lea.vmem [#allocation7], %s371
        %p373 = pneg %p125
        %p374 = pneg %p122
        %s375 = sand.u32 %s162, 1
        %s376 = scalar_lea.sflag [#allocation11], %s375
        %s377 = sand.u32 %s162, 1
        %s378 = smul.addr %s377, 8
        %s379 = scalar_lea.vmem [#allocation10], %s378
        %p380 = pneg %p175
        %p381 = pneg %p172
        %p382 = scmp.lt.s32.totalorder %s38, 1
        %s383 = scalar_select %p382, %s38, 1
        %p384 = scmp.lt.s32.totalorder %s39, 0
        %s385 = scalar_select %p384, %s39, 0
        %s386 = sadd.s32 %s385, %s383
        %s387 = smul.addr %s386, 8
        %s388 = scalar_lea.vmem %s4, %s387
        %p389 = pneg %p203
        %p390 = pneg %p200
        %p391 = pneg %p231
        %p392 = pneg %p228
        %s393 = sand.u32 %s218, 1
        %s394 = scalar_lea.sflag [#allocation9], %s393
        %s395 = sand.u32 %s218, 1
        %s396 = smul.addr %s395, 8
        %s397 = scalar_lea.vmem [#allocation12], %s396
        %p398 = scmp.lt.s32.totalorder %s38, 1
        %s399 = scalar_select %p398, %s38, 1
        %p400 = scmp.lt.s32.totalorder %s39, 0
        %s401 = scalar_select %p400, %s39, 0
        %s402 = sadd.s32 %s401, %s399
        %s403 = smul.addr %s402, 8
        %s404 = scalar_lea.vmem %s1, %s403
        %s405 = sadd.s32 %s38, %s39
        %s406 = sshra.s32 %s405, 7
        %s407 = sand.u32 %s405, 127
        %s408 = sadd.s32 %s406, 2
        %s409 = smul.u32 %s408, 128
        %s410 = sshra.s32 %s405, 7
        %s411 = sand.u32 %s405, 127
        %s412 = sadd.s32 %s409, %s411
        %s413 = sld [smem:[#allocation6 + %s412]]
        %p414 = scmp.lt.s32.totalorder %s40, %s413
        %s415 = scalar_select %p414, %s40, %s413
        %s416 = sadd.s32 %s38, %s39
        %s417 = sshra.s32 %s416, 7
        %s418 = sand.u32 %s416, 127
        %s419 = sadd.s32 %s417, 2
        %s420 = smul.u32 %s419, 128
        %s421 = sshra.s32 %s416, 7
        %s422 = sand.u32 %s416, 127
        %s423 = sadd.s32 %s420, %s422
        %s424 = sld [smem:[#allocation6 + %s423]]
        %p425 = scmp.lt.s32.totalorder %s40, %s424
        %s426 = scalar_select %p425, %s40, %s424
        %p427 = scmp.lt.s32.totalorder %s38, 1
        %s428 = scalar_select %p427, %s38, 1
        %p429 = scmp.lt.s32.totalorder %s39, 0
        %s430 = scalar_select %p429, %s39, 0
        %s431 = sadd.s32 %s430, %s428
        %s432 = smul.addr %s431, 8
        %s433 = scalar_lea.vmem %s4, %s432
        %p435 = scmp.eq.s32.totalorder %s40, 0
        // Predicated region
        $region45: #{tpu_custom_call.1} parent=35 // pred_check
          %p436 = pneg %p435
        $region46: #{tpu_custom_call.1} parent=35 // pred_check_branch
          %438 = sbr.rel (%p436) target = $region48
        $region47: #{tpu_custom_call.1} parent=35 // pred_region
          %vm439 = vcmask 7168
          %440 = vst.msk [vmem:[#allocation2] sm:$0xff] %vm439, -inf
          %441 = vst.msk [vmem:[#allocation3] sm:$0xff] %vm439, 0.0
          %vm442 = vcmask 130048
          %443 = vst.msk [vmem:[#allocation4] sm:$0xff] %vm442, 0.0
        $region48: #{tpu_custom_call.1} parent=35 // pred_fallthru
          _
        %s444 = sadd.s32 %s38, %s39
        %s445 = sld [smem:[#allocation6 + %s444]]
        %s446 = sshra.s32 %s444, 7
        %s447 = sand.u32 %s444, 127
        %s448 = sadd.s32 %s446, 1
        %s449 = smul.u32 %s448, 128
        %s450 = sshra.s32 %s444, 7
        %s451 = sand.u32 %s444, 127
        %s452 = sadd.s32 %s449, %s451
        %s453 = sld [smem:[#allocation6 + %s452]]
        %s454 = smul.u32 %s40, 8
        %p455 = scmp.lt.s32.totalorder %s454, %s453
        // Predicated region
        $region49: #{tpu_custom_call.1} parent=35 // pred_check
          %p456 = pneg %p455
        $region50: #{tpu_custom_call.1} parent=35 // pred_check_branch
          %458 = sbr.rel (%p456) target = $region52
        $region51: #{tpu_custom_call.1} parent=35 // pred_region
          %v459 = vld [vmem:[%s404] sm:$0xff]
          %v460 = vmul.f32 %v459, 0.25503486
          %v461 = vpack.c.bf16 %v460, %v460
          %v462 = vld [vmem:[%s343] sm:$0xff]
          %v463 = vpack.c.bf16 %v462, %v462
          %vm464 = vcmask 261120
          %v466 = vsel %vm464, %v461, 0
          %v469 = vsel %vm464, %v463, 0
          %471 = vmatpush.bf16.xpose.msra.mxu0 0
          %472 = vmatpush.bf16.xpose.msra.mxu0 0
          %473 = vmatpush.bf16.xpose.msra.mxu0 0
          %474 = vmatpush.bf16.xpose.msra.mxu0 0
          %475 = vmatpush.bf16.xpose.msra.mxu0 0
          %476 = vmatpush.bf16.xpose.msra.mxu0 0
          %477 = vmatpush.bf16.xpose.msra.mxu0 0
          %478 = vmatpush.bf16.xpose.msra.mxu0 %v469
          %479 = vmatmul.bf16.gmra.mxu0 %v466
          %v480 = vpop.f32.mrf.mxu0
          %v481 = vadd.f32 0.0, %v480
          %v482 = vpop.f32.mrf.mxu0
          %483 = vdwg.mxu0
          %v484 = vld [vmem:[%s353] sm:$0xff]
          %s485 = sadd.s32 %s454, 8
          %p486 = scmp.ge.s32.totalorder %s445, %s485
          // Predicated region
          $region53: #{tpu_custom_call.1} parent=51 // pred_check
            %p487 = pneg %p486
          $region54: #{tpu_custom_call.1} parent=51 // pred_check_branch
            %489 = sbr.rel (%p487) target = $region56
          $region55: #{tpu_custom_call.1} parent=51 // pred_region
            %v490 = vld [vmem:[#allocation2] sm:$0xff]
            %vm491 = vcmask 64512
            %v492 = vsel %vm491, %v481, -inf
            %493 = vmax.xlane.f32.xlu0 %v492
            %v494 = vpop.xlane.xlu0 %493
            %v495 = vmax.f32 %v490, %v494
            %v496 = vsub.f32 %v490, %v495
            %v497 = vpow.pop %v496
            %499 = vset.pattern.permute.xlu0 0
            %500 = vperm.xlu0 %499, %v495
            %v501 = vpop.permute.xlu0 %500
            %v503 = vsub.f32 %v481, %v501
            %v504 = vpow.pop %v503
            %v505 = vld [vmem:[#allocation3] sm:$0xff]
            %v506 = vmul.f32 %v497, %v505
            %v507 = vsel %vm491, %v504, 0.0
            %508 = vadd.xlane.f32.xlu0 %v507
            %v509 = vpop.xlane.xlu0 %508
            %v510 = vadd.f32 %v506, %v509
            %vm511 = vcmask 7168
            %512 = vst.msk [vmem:[#allocation3] sm:$0xff] %vm511, %v510
            %v513 = vld [vmem:[#allocation4] sm:$0xff]
            %515 = vset.pattern.permute.xlu0 0
            %516 = vperm.xlu0 %515, %v497
            %v517 = vpop.permute.xlu0 %516
            %v519 = vmul.f32 %v517, %v513
            %v520 = vpack.c.bf16 %v504, %v504
            %v521 = vpack.c.bf16 %v484, %v484
            %v523 = vsel %vm491, %v520, 0
            %vm525 = vcmask 1043456
            %v527 = vsel %vm525, %v521, 0
            %529 = vmatpush.bf16.msra.mxu0 0
            %530 = vmatpush.bf16.msra.mxu0 0
            %531 = vmatpush.bf16.msra.mxu0 0
            %532 = vmatpush.bf16.msra.mxu0 0
            %533 = vmatpush.bf16.msra.mxu0 0
            %534 = vmatpush.bf16.msra.mxu0 0
            %535 = vmatpush.bf16.msra.mxu0 0
            %536 = vmatpush.bf16.msra.mxu0 %v527
            %537 = vmatmul.bf16.gmra.mxu0 %v523
            %v538 = vpop.f32.mrf.mxu0
            %v539 = vadd.f32 0.0, %v538
            %v540 = vpop.f32.mrf.mxu0
            %541 = vdwg.mxu0
            %v542 = vadd.f32 %v519, %v539
            %vm543 = vcmask 130048
            %544 = vst.msk [vmem:[#allocation4] sm:$0xff] %vm543, %v542
            %545 = vst.msk [vmem:[#allocation2] sm:$0xff] %vm511, %v495
          $region56: #{tpu_custom_call.1} parent=51 // pred_fallthru
            _
          %p546 = scmp.lt.s32.totalorder %s445, %s485
          // Predicated region
          $region57: #{tpu_custom_call.1} parent=51 // pred_check
            %p547 = pneg %p546
          $region58: #{tpu_custom_call.1} parent=51 // pred_check_branch
            %549 = sbr.rel (%p547) target = $region60
          $region59: #{tpu_custom_call.1} parent=51 // pred_region
            %v550 = vld [vmem:[%s433] sm:$0xff]
            %v551 = vstv %s454
            %v552 = vsub.s32 %v550, %v551
            %v553 = vlaneseq
            %v554 = vand.u32 %v553, 127
            %555 = vset.pattern.permute.xlu0 0
            %556 = vperm.xlu0 %555, %v552
            %v557 = vpop.permute.xlu0 %556
            %vm558 = vcmp.lt.s32.totalorder %v554, %v557
            %v559 = vsel %vm558, %v481, -1e+30
            %v560 = vld [vmem:[#allocation2] sm:$0xff]
            %vm561 = vcmask 64512
            %v562 = vsel %vm561, %v559, -inf
            %563 = vmax.xlane.f32.xlu0 %v562
            %v564 = vpop.xlane.xlu0 %563
            %v565 = vmax.f32 %v560, %v564
            %v566 = vsub.f32 %v560, %v565
            %v567 = vpow.pop %v566
            %569 = vset.pattern.permute.xlu0 0
            %570 = vperm.xlu0 %569, %v565
            %v571 = vpop.permute.xlu0 %570
            %v573 = vsub.f32 %v559, %v571
            %v574 = vpow.pop %v573
            %v575 = vsel %vm558, %v574, 0.0
            %v576 = vld [vmem:[#allocation3] sm:$0xff]
            %v577 = vmul.f32 %v567, %v576
            %v578 = vsel %vm561, %v575, 0.0
            %579 = vadd.xlane.f32.xlu0 %v578
            %v580 = vpop.xlane.xlu0 %579
            %v581 = vadd.f32 %v577, %v580
            %vm582 = vcmask 7168
            %583 = vst.msk [vmem:[#allocation3] sm:$0xff] %vm582, %v581
            %v584 = vld [vmem:[#allocation4] sm:$0xff]
            %586 = vset.pattern.permute.xlu0 0
            %587 = vperm.xlu0 %586, %v567
            %v588 = vpop.permute.xlu0 %587
            %v590 = vmul.f32 %v588, %v584
            %v591 = vpack.c.bf16 %v575, %v575
            %v592 = vpack.c.bf16 %v484, %v484
            %v594 = vsel %vm561, %v591, 0
            %vm596 = vcmask 1043456
            %v598 = vsel %vm596, %v592, 0
            %600 = vmatpush.bf16.msra.mxu0 0
            %601 = vmatpush.bf16.msra.mxu0 0
            %602 = vmatpush.bf16.msra.mxu0 0
            %603 = vmatpush.bf16.msra.mxu0 0
            %604 = vmatpush.bf16.msra.mxu0 0
            %605 = vmatpush.bf16.msra.mxu0 0
            %606 = vmatpush.bf16.msra.mxu0 0
            %607 = vmatpush.bf16.msra.mxu0 %v598
            %608 = vmatmul.bf16.gmra.mxu0 %v594
            %v609 = vpop.f32.mrf.mxu0
            %v610 = vadd.f32 0.0, %v609
            %v611 = vpop.f32.mrf.mxu0
            %612 = vdwg.mxu0
            %v613 = vadd.f32 %v590, %v610
            %vm614 = vcmask 130048
            %615 = vst.msk [vmem:[#allocation4] sm:$0xff] %vm614, %v613
            %616 = vst.msk [vmem:[#allocation2] sm:$0xff] %vm582, %v565
          $region60: #{tpu_custom_call.1} parent=51 // pred_fallthru
            _
        $region52: #{tpu_custom_call.1} parent=35 // pred_fallthru
          _
        // Predicated region
        $region61: #{tpu_custom_call.1} parent=35 // pred_check
          %p617 = pneg %p435
        $region62: #{tpu_custom_call.1} parent=35 // pred_check_branch
          %619 = sbr.rel (%p617) target = $region64
        $region63: #{tpu_custom_call.1} parent=35 // pred_region
          %v620 = vld [vmem:[#allocation3] sm:$0xff]
          %v621 = vrcp.pop %v620
          %v622 = vmul.f32 %v620, %v621
          %v623 = vsub.f32 2.0, %v622
          %v624 = vmul.f32 %v621, %v623
          %v625 = vld [vmem:[#allocation4] sm:$0xff]
          %627 = vset.pattern.permute.xlu0 0
          %628 = vperm.xlu0 %627, %v624
          %v629 = vpop.permute.xlu0 %628
          %v631 = vmul.f32 %v625, %v629
          %vm632 = vcmask 130048
          %633 = vst.msk [vmem:[%s397] sm:$0xff] %vm632, %v631
        $region64: #{tpu_custom_call.1} parent=35 // pred_fallthru
          _
        %s634 = sand.u32 %s218, 1
        %s635 = scalar_lea.sflag [#allocation9], %s634
        %s636 = sand.u32 %s218, 1
        %s637 = smul.addr %s636, 8
        %s638 = scalar_lea.vmem [#allocation12], %s637
        // Predicated region
        $region65: #{tpu_custom_call.1} parent=35 // pred_check
          %p639 = pneg %p228
        $region66: #{tpu_custom_call.1} parent=35 // pred_check_branch
          %641 = sbr.rel (%p639) target = $region68
        $region67: #{tpu_custom_call.1} parent=35 // pred_region
          %643 = vsyncadd %s635, 0
          %s644 = sadd.s32 %s39, %s38
          %s645 = smul.addr %s644, 8
          %s646 = scalar_lea.hbm %s5, %s645
          %s648 = sshll.u32 %s638, 4
          %s649 = int_to_ptr.vmem [resolvable:$true] %s648
          %s650 = sshll.u32 %s646, 4
          %s651 = int_to_ptr.hbm [resolvable:$true] %s650
          %653 = dma.vmem_to_hbm [thread:$0]  %s649, 128, %s651, %s635
        $region68: #{tpu_custom_call.1} parent=35 // pred_fallthru
          _
      $region36: #{tpu_custom_call.1} parent=5 // pred_fallthru
        _
      %p654 = scmp.le.s32.totalorder 2, %s28
      // Predicated region
      $region69: #{tpu_custom_call.1} parent=5 // pred_check
        %p655 = pneg %p654
      $region70: #{tpu_custom_call.1} parent=5 // pred_check_branch
        %657 = sbr.rel (%p655) target = $region72
      $region71: #{tpu_custom_call.1} parent=5 // pred_region
        %s658 = ssub.s32 %s28, 2
        // Predicated region
        $region73: #{tpu_custom_call.1} parent=71 // pred_check
          %p659 = pneg %p234
        $region74: #{tpu_custom_call.1} parent=71 // pred_check_branch
          %661 = sbr.rel (%p659) target = $region76
        $region75: #{tpu_custom_call.1} parent=71 // pred_region
          %s662 = sand.u32 %s219, 1
          %s663 = scalar_lea.sflag [#allocation9], %s662
          %s664 = sand.u32 %s219, 1
          %s665 = smul.addr %s664, 8
          %s666 = scalar_lea.vmem [#allocation12], %s665
          %668 = dma.done %s663, 128
        $region76: #{tpu_custom_call.1} parent=71 // pred_fallthru
          _
      $region72: #{tpu_custom_call.1} parent=5 // pred_fallthru
        _
    $region6: #{tpu_custom_call.1} parent=1 // loop_footer
      %s32 = sadd.s32 1, %s28
    $region7: #{tpu_custom_call.1} parent=1 // loop_footer_branch
      %27 = sbr.rel target = $region3
    $region8: #{tpu_custom_call.1} parent=1 // loop_exit
      _
    %669 = vsyncpa [#allocation8], 1
    %s670 = scalar_lea.sflag [#allocation8], 1
    %671 = vsyncpa %s670, 1
    %672 = vsyncpa [#allocation11], 1
    %s673 = scalar_lea.sflag [#allocation11], 1
    %674 = vsyncpa %s673, 1
    %675 = vsyncpa [#allocation9], 1
    %s676 = scalar_lea.sflag [#allocation9], 1
    %677 = vsyncpa %s676, 1

</llo_original>
